<compile_context>
chip_gen: v6e
topology: v6e:2x2x1
jax: 0.10.0
libtpu: 0.0.40
codegen_flags: <defaults>
</compile_context>

<pallas_src>
import jax
import jax.numpy as jnp
from jax.experimental import pallas as pl
from jax.experimental.pallas import tpu as pltpu


_VMEM_LIMIT = 48 * 2 ** 20          # safe on v7x (64 MiB phys), generous on v5e/v6e
_P1_INPUT_BUDGET = 24 * 2 ** 20     # double-buffered pass-1 gather block budget
_P2_BLOCK_BYTES = 4 * 2 ** 20       # pass-2 x / out block target size


def _round_up(a: int, b: int) -> int:
    return ((a + b - 1) // b) * b


def _round_down(a: int, b: int) -> int:
    return (a // b) * b


def _ceil_div(a: int, b: int) -> int:
    return -(-a // b)


# ---------------------------------------------------------------------------
# Pass 1: per-(folded)row sum(|det|) over triangle tiles -> partial sums.
# g_ref block: (9, R1, TT); component c = 3*vertex + coord, free leading index.
# ---------------------------------------------------------------------------
def _det_partial_kernel(g_ref, part_ref, acc_ref):
    k = pl.program_id(1)

    @pl.when(k == 0)
    def _init():
        acc_ref[...] = jnp.zeros_like(acc_ref)

    p0x = g_ref[0].astype(jnp.float32)
    p0y = g_ref[1].astype(jnp.float32)
    p0z = g_ref[2].astype(jnp.float32)
    p1x = g_ref[3].astype(jnp.float32)
    p1y = g_ref[4].astype(jnp.float32)
    p1z = g_ref[5].astype(jnp.float32)
    p2x = g_ref[6].astype(jnp.float32)
    p2y = g_ref[7].astype(jnp.float32)
    p2z = g_ref[8].astype(jnp.float32)

    # scalar triple product = det of the 3x3 with rows (p0, p1, p2); padded
    # (degenerate) triangles are [0,0,0] and contribute exactly 0.
    det = (p0x * (p1y * p2z - p1z * p2y)
           - p0y * (p1x * p2z - p1z * p2x)
           + p0z * (p1x * p2y - p1y * p2x))                 # (R1, TT)
    acc_ref[...] += jnp.sum(jnp.abs(det), axis=-1, keepdims=True)

    @pl.when(k == pl.num_programs(1) - 1)
    def _finalize():
        part_ref[0, :, :] = acc_ref[...]


# ---------------------------------------------------------------------------
# Pass 2: elementwise per-row rescale, output aliased to input (in place).
# ---------------------------------------------------------------------------
def _scale_kernel(x_ref, s_ref, o_ref):
    o_ref[...] = (x_ref[...] * s_ref[...]).astype(o_ref.dtype)


def volume_normalizer(x, M, volume_const):
    """x: (B, ...) with total 3*P elements per row (point-major / coord-minor);
    M: (T, 3) int32 triangle vertex indices; volume_const: scalar."""
    temp = x.shape
    B = temp[0]
    x_flat = x.reshape(B, -1)
    N = x_flat.shape[1]                 # 3 * P
    T = M.shape[0]

    # ---------------- pass 1 geometry --------------------------------------
    F1 = _ceil_div(8, B) if B < 8 else 1            # sublane fold of the batch dim
    R1 = B * F1
    # Lane tile over folded triangles: double-buffered (9, R1, TT) f32 input
    # block stays under the budget.
    # TODO(synk): for very large B, R1 should be tiled too (extra parallel axis).
    tt = _round_down(_P1_INPUT_BUDGET // (2 * 9 * R1 * 4), 128)
    TT = max(128, min(4096, tt))
    TT = min(TT, _round_up(_ceil_div(T, F1), 128))
    n_tiles = _ceil_div(_ceil_div(T, F1), TT)
    NH = 2 if n_tiles >= 2 else 1                   # independent halves (v7x 2 TCs)
    n_tiles = _round_up(n_tiles, NH)
    L1 = n_tiles * TT
    Tp = F1 * L1
    KH = n_tiles // NH

    # Pad M (not the gathered data) with degenerate [0,0,0] triangles: det == 0.
    M_pad = jnp.pad(M.astype(jnp.int32), ((0, Tp - T), (0, 0)))
    base = jnp.transpose(M_pad) * 3                                     # (3, Tp)
    idx = (base[:, None, :]
           + jnp.arange(3, dtype=jnp.int32)[None, :, None]).reshape(9, Tp)

    # ONE fused gather -> (9, B, Tp); contiguous (free) reshape does the fold.
    gathered = jax.vmap(lambda ind: jnp.take(x_flat, ind, axis=1))(idx)
    g = gathered.reshape(9, R1, L1)
    # TODO(synk): an in-kernel gather from a VMEM-resident x_flat would cut
    # pass-1 HBM traffic ~10x further on v6e/v7x; kept as one fused XLA gather
    # for portable lowering (v5e lane-gather can serialize).

    partials = pl.pallas_call(
        _det_partial_kernel,
        out_shape=jax.ShapeDtypeStruct((NH, R1, 1), jnp.float32),
        grid=(NH, KH),
        in_specs=[pl.BlockSpec((9, R1, TT), lambda h, k: (0, 0, h * KH + k))],
        out_specs=pl.BlockSpec((1, R1, 1), lambda h, k: (h, 0, 0)),
        scratch_shapes=[pltpu.VMEM((R1, 1), jnp.float32)],
        compiler_params=pltpu.CompilerParams(
            dimension_semantics=("parallel", "arbitrary"),
            vmem_limit_bytes=_VMEM_LIMIT),
    )(g)

    # Tiny O(B) finalize in the wrapper: volume_const stays a runtime value.
    vol = partials.reshape(NH, B, F1).sum(axis=(0, 2)) / 6.0            # (B,)
    # TODO(synk): no clamp for degenerate vol == 0 (matches the PyTorch ref).
    scale = (volume_const / (vol ** (1.0 / 3.0))).astype(jnp.float32)   # (B,)

    # ---------------- pass 2: x * scale, in place ---------------------------
    F2 = 1
    if B < 8:
        for f in range(min(8, _ceil_div(8, B)), 0, -1):
            if N % f == 0:
                F2 = f
                break
    R2 = B * F2
    L2 = N // F2
    x_fold = x_flat.reshape(R2, L2)                  # contiguous view, no copy/pad
    scale_rep = jnp.repeat(scale.reshape(B, 1), F2, axis=0)             # (R2, 1)

    TR = R2 if R2 <= 1024 else 1024
    tn = _round_down(max(_P2_BLOCK_BYTES // (TR * 4), 128), 128)
    TN = L2 if L2 <= tn else min(tn, 8192)
    grid2 = (_ceil_div(R2, TR), _ceil_div(L2, TN))

    y = pl.pallas_call(
        _scale_kernel,
        out_shape=jax.ShapeDtypeStruct((R2, L2), x.dtype),
        grid=grid2,
        in_specs=[pl.BlockSpec((TR, TN), lambda i, j: (i, j)),
                  pl.BlockSpec((TR, 1), lambda i, j: (i, 0))],
        out_specs=pl.BlockSpec((TR, TN), lambda i, j: (i, j)),
        input_output_aliases={0: 0},
        compiler_params=pltpu.CompilerParams(
            dimension_semantics=("parallel", "parallel"),
            vmem_limit_bytes=_VMEM_LIMIT),
    )(x_fold, scale_rep)

    return y.reshape(temp)


def volume_normalizer_ref(x, M, volume_const):
    """Pure-JAX reference mirroring the PyTorch forward."""
    B = x.shape[0]
    xr = x.reshape(B, -1, 3)
    tri = xr[:, M, :]                                 # (B, T, 3, 3)
    det = jnp.linalg.det(tri)                         # (B, T)
    vol = jnp.sum(jnp.abs(det), axis=1) / 6.0         # (B,)
    scale = volume_const / (vol ** (1.0 / 3.0))
    return (xr * scale[:, None, None]).reshape(x.shape)


if __name__ == "__main__":
    key = jax.random.PRNGKey(0)
    k_x, k_ref = jax.random.split(key)

    B, P, T = 2, 16, 8                 # batch, points, triangles
    x = jax.random.normal(k_x, (B, 3 * P), dtype=jnp.float32)

    # Deterministic stand-in for the module's M ("newtriangles"): (T, 3) indices.
    t = jnp.arange(T)
    M = jnp.stack([(3 * t) % P, (3 * t + 1) % P, (3 * t + 2) % P],
                  axis=1).astype(jnp.int32)

    # Deterministic stand-in for the module-level global
    #   volume_const = volume(points[newtriangles]) ** (1/3)
    # computed from a synthetic reference point cloud (no file I/O).
    ref_pts = jax.random.normal(k_ref, (P, 3), dtype=jnp.float32)
    ref_vol = jnp.sum(jnp.abs(jnp.linalg.det(ref_pts[M]))) / 6.0
    volume_const = float(ref_vol ** (1.0 / 3.0))

    vn = jax.jit(volume_normalizer)
    out = jax.block_until_ready(vn(x, M, volume_const))

    ref = volume_normalizer_ref(x, M, volume_const)
    assert out.shape == x.shape and out.dtype == x.dtype
    assert jnp.allclose(out, ref, rtol=1e-4, atol=1e-5), "mismatch vs reference"

    print("KERNEL_OK")
</pallas_src>

<mosaic_0001>
module attributes {stable_mosaic.version = 11 : i64} {
  func.func @_det_partial_kernel(%arg0: i32, %arg1: i32, %arg2: memref<9x8x128xf32, #tpu.memory_space<vmem>>, %arg3: memref<1x8x1xf32, #tpu.memory_space<vmem>>, %arg4: memref<8x1xf32, #tpu.memory_space<vmem>>) attributes {dimension_semantics = [#tpu.dimension_semantics<parallel>, #tpu.dimension_semantics<arbitrary>], iteration_bounds = array<i64: 1, 1>, scalar_prefetch = 0 : i64, scratch_operands = 1 : i64, tpu.core_type = #tpu.core_type<tc>, window_params = [{transform_indices = @transform_0, window_bounds = array<i64: 9, 8, 128>}, {transform_indices = @transform_1, window_bounds = array<i64: 1, 8, 1>}]} {
    %c0_i32 = arith.constant 0 : i32
    %0 = arith.cmpi eq, %arg1, %c0_i32 : i32
    %1 = arith.extui %0 : i1 to i32
    %c0_i32_0 = arith.constant 0 : i32
    %2 = arith.cmpi ne, %1, %c0_i32_0 : i32
    scf.if %2 {
      %cst_25 = arith.constant 0.000000e+00 : f32
      %44 = vector.broadcast %cst_25 : f32 to vector<8x1xf32>
      %c0_26 = arith.constant 0 : index
      %c0_27 = arith.constant 0 : index
      %45 = vector.load %arg4[%c0_26, %c0_27] : memref<8x1xf32, #tpu.memory_space<vmem>>, vector<8x1xf32>
      tpu.vector_store %arg4[%c0_26, %c0_27], %44 {strides = array<i32>} : memref<8x1xf32, #tpu.memory_space<vmem>>, vector<8x1xf32>,
    } else {
    }
    %c0 = arith.constant 0 : index
    %c0_1 = arith.constant 0 : index
    %c0_2 = arith.constant 0 : index
    %3 = vector.load %arg2[%c0, %c0_1, %c0_2] : memref<9x8x128xf32, #tpu.memory_space<vmem>>, vector<1x8x128xf32>
    %4 = vector.shape_cast %3 : vector<1x8x128xf32> to vector<8x128xf32>
    %c1 = arith.constant 1 : index
    %c0_3 = arith.constant 0 : index
    %c0_4 = arith.constant 0 : index
    %5 = vector.load %arg2[%c1, %c0_3, %c0_4] : memref<9x8x128xf32, #tpu.memory_space<vmem>>, vector<1x8x128xf32>
    %6 = vector.shape_cast %5 : vector<1x8x128xf32> to vector<8x128xf32>
    %c2 = arith.constant 2 : index
    %c0_5 = arith.constant 0 : index
    %c0_6 = arith.constant 0 : index
    %7 = vector.load %arg2[%c2, %c0_5, %c0_6] : memref<9x8x128xf32, #tpu.memory_space<vmem>>, vector<1x8x128xf32>
    %8 = vector.shape_cast %7 : vector<1x8x128xf32> to vector<8x128xf32>
    %c3 = arith.constant 3 : index
    %c0_7 = arith.constant 0 : index
    %c0_8 = arith.constant 0 : index
    %9 = vector.load %arg2[%c3, %c0_7, %c0_8] : memref<9x8x128xf32, #tpu.memory_space<vmem>>, vector<1x8x128xf32>
    %10 = vector.shape_cast %9 : vector<1x8x128xf32> to vector<8x128xf32>
    %c4 = arith.constant 4 : index
    %c0_9 = arith.constant 0 : index
    %c0_10 = arith.constant 0 : index
    %11 = vector.load %arg2[%c4, %c0_9, %c0_10] : memref<9x8x128xf32, #tpu.memory_space<vmem>>, vector<1x8x128xf32>
    %12 = vector.shape_cast %11 : vector<1x8x128xf32> to vector<8x128xf32>
    %c5 = arith.constant 5 : index
    %c0_11 = arith.constant 0 : index
    %c0_12 = arith.constant 0 : index
    %13 = vector.load %arg2[%c5, %c0_11, %c0_12] : memref<9x8x128xf32, #tpu.memory_space<vmem>>, vector<1x8x128xf32>
    %14 = vector.shape_cast %13 : vector<1x8x128xf32> to vector<8x128xf32>
    %c6 = arith.constant 6 : index
    %c0_13 = arith.constant 0 : index
    %c0_14 = arith.constant 0 : index
    %15 = vector.load %arg2[%c6, %c0_13, %c0_14] : memref<9x8x128xf32, #tpu.memory_space<vmem>>, vector<1x8x128xf32>
    %16 = vector.shape_cast %15 : vector<1x8x128xf32> to vector<8x128xf32>
    %c7 = arith.constant 7 : index
    %c0_15 = arith.constant 0 : index
    %c0_16 = arith.constant 0 : index
    %17 = vector.load %arg2[%c7, %c0_15, %c0_16] : memref<9x8x128xf32, #tpu.memory_space<vmem>>, vector<1x8x128xf32>
    %18 = vector.shape_cast %17 : vector<1x8x128xf32> to vector<8x128xf32>
    %c8 = arith.constant 8 : index
    %c0_17 = arith.constant 0 : index
    %c0_18 = arith.constant 0 : index
    %19 = vector.load %arg2[%c8, %c0_17, %c0_18] : memref<9x8x128xf32, #tpu.memory_space<vmem>>, vector<1x8x128xf32>
    %20 = vector.shape_cast %19 : vector<1x8x128xf32> to vector<8x128xf32>
    %21 = arith.mulf %12, %20 : vector<8x128xf32>
    %22 = arith.mulf %14, %18 : vector<8x128xf32>
    %23 = arith.subf %21, %22 : vector<8x128xf32>
    %24 = arith.mulf %4, %23 : vector<8x128xf32>
    %25 = arith.mulf %10, %20 : vector<8x128xf32>
    %26 = arith.mulf %14, %16 : vector<8x128xf32>
    %27 = arith.subf %25, %26 : vector<8x128xf32>
    %28 = arith.mulf %6, %27 : vector<8x128xf32>
    %29 = arith.subf %24, %28 : vector<8x128xf32>
    %30 = arith.mulf %10, %18 : vector<8x128xf32>
    %31 = arith.mulf %12, %16 : vector<8x128xf32>
    %32 = arith.subf %30, %31 : vector<8x128xf32>
    %33 = arith.mulf %8, %32 : vector<8x128xf32>
    %34 = arith.addf %29, %33 : vector<8x128xf32>
    %c0_19 = arith.constant 0 : index
    %c0_20 = arith.constant 0 : index
    %35 = vector.load %arg4[%c0_19, %c0_20] : memref<8x1xf32, #tpu.memory_space<vmem>>, vector<8x1xf32>
    %36 = math.absf %34 : vector<8x128xf32>
    %cst = arith.constant dense<0.000000e+00> : vector<8xf32>
    %37 = vector.multi_reduction <add>, %36, %cst [1] : vector<8x128xf32> to vector<8xf32>
    %38 = vector.shape_cast %37 : vector<8xf32> to vector<8x1xf32>
    %39 = arith.addf %35, %38 : vector<8x1xf32>
    %c0_21 = arith.constant 0 : index
    %c0_22 = arith.constant 0 : index
    %40 = vector.load %arg4[%c0_21, %c0_22] : memref<8x1xf32, #tpu.memory_space<vmem>>, vector<8x1xf32>
    tpu.vector_store %arg4[%c0_21, %c0_22], %39 {strides = array<i32>} : memref<8x1xf32, #tpu.memory_space<vmem>>, vector<8x1xf32>,
    %c0_i32_23 = arith.constant 0 : i32
    %41 = arith.cmpi eq, %arg1, %c0_i32_23 : i32
    %42 = arith.extui %41 : i1 to i32
    %c0_i32_24 = arith.constant 0 : i32
    %43 = arith.cmpi ne, %42, %c0_i32_24 : i32
    scf.if %43 {
      %c0_25 = arith.constant 0 : index
      %c0_26 = arith.constant 0 : index
      %44 = vector.load %arg4[%c0_25, %c0_26] : memref<8x1xf32, #tpu.memory_space<vmem>>, vector<8x1xf32>
      %c0_27 = arith.constant 0 : index
      %c0_28 = arith.constant 0 : index
      %c0_29 = arith.constant 0 : index
      %45 = vector.load %arg3[%c0_27, %c0_28, %c0_29] : memref<1x8x1xf32, #tpu.memory_space<vmem>>, vector<1x8x1xf32>
      %46 = vector.shape_cast %45 : vector<1x8x1xf32> to vector<8x1xf32>
      %47 = vector.shape_cast %44 : vector<8x1xf32> to vector<1x8x1xf32>
      tpu.vector_store %arg3[%c0_27, %c0_28, %c0_29], %47 {strides = array<i32>} : memref<1x8x1xf32, #tpu.memory_space<vmem>>, vector<1x8x1xf32>,
    } else {
    }
    return
  }
  func.func @transform_0(%arg0: i32, %arg1: i32) -> (i32, i32, i32) {
    %c1_i32 = arith.constant 1 : i32
    %0 = arith.muli %arg0, %c1_i32 : i32
    %1 = arith.addi %0, %arg1 : i32
    %c0_i32 = arith.constant 0 : i32
    %c0_i32_0 = arith.constant 0 : i32
    %c0_i32_1 = arith.constant 0 : i32
    return %c0_i32, %c0_i32_0, %1 : i32, i32, i32
  }
  func.func @transform_1(%arg0: i32, %arg1: i32) -> (i32, i32, i32) {
    %c0_i32 = arith.constant 0 : i32
    %c0_i32_0 = arith.constant 0 : i32
    %c0_i32_1 = arith.constant 0 : i32
    return %arg0, %c0_i32, %c0_i32_0 : i32, i32, i32
  }
}

module attributes {stable_mosaic.version = 11 : i64} {
  func.func @_scale_kernel(%arg0: i32, %arg1: i32, %arg2: memref<8x12xf32, #tpu.memory_space<vmem>>, %arg3: memref<8x1xf32, #tpu.memory_space<vmem>>, %arg4: memref<8x12xf32, #tpu.memory_space<vmem>>) attributes {dimension_semantics = [#tpu.dimension_semantics<parallel>, #tpu.dimension_semantics<parallel>], iteration_bounds = array<i64: 1, 1>, scalar_prefetch = 0 : i64, scratch_operands = 0 : i64, tpu.core_type = #tpu.core_type<tc>, window_params = [{transform_indices = @transform_0, window_bounds = array<i64: 8, 12>}, {transform_indices = @transform_1, window_bounds = array<i64: 8, 1>}, {transform_indices = @transform_2, window_bounds = array<i64: 8, 12>}]} {
    %c0 = arith.constant 0 : index
    %c0_0 = arith.constant 0 : index
    %0 = vector.load %arg2[%c0, %c0_0] : memref<8x12xf32, #tpu.memory_space<vmem>>, vector<8x12xf32>
    %c0_1 = arith.constant 0 : index
    %c0_2 = arith.constant 0 : index
    %1 = vector.load %arg3[%c0_1, %c0_2] : memref<8x1xf32, #tpu.memory_space<vmem>>, vector<8x1xf32>
    %2 = vector.broadcast %1 : vector<8x1xf32> to vector<8x12xf32>
    %3 = arith.mulf %0, %2 : vector<8x12xf32>
    %c0_3 = arith.constant 0 : index
    %c0_4 = arith.constant 0 : index
    %4 = vector.load %arg4[%c0_3, %c0_4] : memref<8x12xf32, #tpu.memory_space<vmem>>, vector<8x12xf32>
    tpu.vector_store %arg4[%c0_3, %c0_4], %3 {strides = array<i32>} : memref<8x12xf32, #tpu.memory_space<vmem>>, vector<8x12xf32>,
    return
  }
  func.func @transform_0(%arg0: i32, %arg1: i32) -> (i32, i32) {
    %c0_i32 = arith.constant 0 : i32
    return %arg0, %arg1 : i32, i32
  }
  func.func @transform_1(%arg0: i32, %arg1: i32) -> (i32, i32) {
    %c0_i32 = arith.constant 0 : i32
    %c0_i32_0 = arith.constant 0 : i32
    return %arg0, %c0_i32 : i32, i32
  }
  func.func @transform_2(%arg0: i32, %arg1: i32) -> (i32, i32) {
    %c0_i32 = arith.constant 0 : i32
    return %arg0, %arg1 : i32, i32
  }
}

</mosaic_0001>

<llo_original>
// kernel: volume_normalizer.3
$region0: #{volume_normalizer.3}
  #allocation0 [shape = 'u32[]', space=smem, size = 0x4, offset = 0x4, fixed_abs, tag = 'smem constant byte address 0x4 - core index']
  #allocation1 [shape = 'u32[144,128]{1,0:T(1,128)}', space=vmem, size = 0x12000, scoped, tag = 'internal scratch']
  %s0 = inlined_call_operand.vmem [shape: f32[8,12], index: 0, kind: input, shape index: {}, may-alias: {0,2}]
  %s1 = inlined_call_operand.vmem [shape: f32[8,1], index: 1, kind: input, shape index: {}]
  %s2 = inlined_call_operand.vmem [shape: f32[8,12], index: 2, kind: output, shape index: {}, may-alias: {0,2}]
  %s3 = sld [smem:[#allocation0]]
  $region18: #{volume_normalizer.3} parent=0
    _
  %s5 = ssub.s32 1, %s3
  %s6 = scalar_select 0, %s5, %s3
  // Predicated region
  $region2: #{volume_normalizer.3} parent=0 // pred_check
    _
  $region3: #{volume_normalizer.3} parent=0 // pred_check_branch
    %8 = sbr.rel (0) target = $region5
  $region4: #{volume_normalizer.3} parent=0 // pred_region
    _
  $region5: #{volume_normalizer.3} parent=0 // pred_fallthru
    _
  // Predicated region
  $region6: #{volume_normalizer.3} parent=0 // pred_check
    _
  $region7: #{volume_normalizer.3} parent=0 // pred_check_branch
    %10 = sbr.rel (0) target = $region9
  $region8: #{volume_normalizer.3} parent=0 // pred_region
    _
  $region9: #{volume_normalizer.3} parent=0 // pred_fallthru
    _
  %v11 = vld [vmem:[%s0] sm:$0xff]
  %v12 = vld [vmem:[%s1] sm:$0xff]
  %14 = vset.pattern.permute.xlu0 0
  %15 = vperm.xlu0 %14, %v12
  %v16 = vpop.permute.xlu0 %15
  %v18 = vmul.f32 %v11, %v16
  %vm19 = vcmask 97280
  %20 = vst.msk [vmem:[%s2] sm:$0xff] %vm19, %v18
  // Predicated region
  $region10: #{volume_normalizer.3} parent=0 // pred_check
    _
  $region11: #{volume_normalizer.3} parent=0 // pred_check_branch
    %22 = sbr.rel (0) target = $region13
  $region12: #{volume_normalizer.3} parent=0 // pred_region
    _
  $region13: #{volume_normalizer.3} parent=0 // pred_fallthru
    _
  // Predicated region
  $region14: #{volume_normalizer.3} parent=0 // pred_check
    _
  $region15: #{volume_normalizer.3} parent=0 // pred_check_branch
    %24 = sbr.rel (0) target = $region17
  $region16: #{volume_normalizer.3} parent=0 // pred_region
    _
  $region17: #{volume_normalizer.3} parent=0 // pred_fallthru
    _

// kernel: volume_normalizer.2
$region0: #{volume_normalizer.2}
  #allocation0 [shape = 'u32[]', space=smem, size = 0x4, offset = 0x4, fixed_abs, tag = 'smem constant byte address 0x4 - core index']
  #allocation1 [shape = 'u32[144,128]{1,0:T(1,128)}', space=vmem, size = 0x12000, scoped, tag = 'internal scratch']
  #allocation2 [shape = 'f32[8,1]{1,0:T(8,128)}', space=vmem, size = 0x1000, scoped, tag = 'scratch operand']
  %s0 = inlined_call_operand.vmem [shape: f32[9,8,128], index: 0, kind: input, shape index: {}]
  %s1 = inlined_call_operand.vmem [shape: f32[1,8,1], index: 1, kind: output, shape index: {}]
  %s2 = sld [smem:[#allocation0]]
  $region22: #{volume_normalizer.2} parent=0
    _
  %s4 = ssub.s32 1, %s2
  %s5 = scalar_select 0, %s4, %s2
  // Predicated region
  $region2: #{volume_normalizer.2} parent=0 // pred_check
    _
  $region3: #{volume_normalizer.2} parent=0 // pred_check_branch
    %7 = sbr.rel (0) target = $region5
  $region4: #{volume_normalizer.2} parent=0 // pred_region
    %s8 = sadd.s32 0, 0
    %p9 = scmp.lt.s32.totalorder %s8, 0
    %s10 = scalar_select %p9, %s8, 0
    %s11 = smul.addr %s10, 8
    %s12 = scalar_lea.vmem %s0, %s11
    %s13 = sadd.s32 0, 0
  $region5: #{volume_normalizer.2} parent=0 // pred_fallthru
    _
  %s14 = sadd.s32 0, 0
  %p15 = scmp.lt.s32.totalorder %s14, 0
  %s16 = scalar_select %p15, %s14, 0
  %s17 = smul.addr %s16, 8
  %s18 = scalar_lea.vmem %s0, %s17
  %s19 = sadd.s32 0, 0
  %p20 = scmp.lt.s32.totalorder %s19, 0
  %s21 = scalar_select %p20, %s19, 0
  %s22 = smul.addr %s21, 8
  %s23 = scalar_lea.vmem %s0, %s22
  %s24 = sadd.s32 0, 0
  %p25 = scmp.eq.s32.totalorder 0, 0
  // Predicated region
  $region6: #{volume_normalizer.2} parent=0 // pred_check
    %p26 = pneg %p25
  $region7: #{volume_normalizer.2} parent=0 // pred_check_branch
    %28 = sbr.rel (%p26) target = $region9
  $region8: #{volume_normalizer.2} parent=0 // pred_region
    %vm29 = vcmask 7168
    %30 = vst.msk [vmem:[#allocation2] sm:$0xff] %vm29, 0.0
  $region9: #{volume_normalizer.2} parent=0 // pred_fallthru
    _
  %v31 = vld [vmem:[%s23] sm:$0xff]
  %s32 = scalar_lea.vmem %s23, 8
  %v33 = vld [vmem:[%s32] sm:$0xff]
  %s34 = scalar_lea.vmem %s23, 16
  %v35 = vld [vmem:[%s34] sm:$0xff]
  %s36 = scalar_lea.vmem %s23, 24
  %v37 = vld [vmem:[%s36] sm:$0xff]
  %s38 = scalar_lea.vmem %s23, 32
  %v39 = vld [vmem:[%s38] sm:$0xff]
  %s40 = scalar_lea.vmem %s23, 40
  %v41 = vld [vmem:[%s40] sm:$0xff]
  %s42 = scalar_lea.vmem %s23, 48
  %v43 = vld [vmem:[%s42] sm:$0xff]
  %s44 = scalar_lea.vmem %s23, 56
  %v45 = vld [vmem:[%s44] sm:$0xff]
  %s46 = scalar_lea.vmem %s23, 64
  %v47 = vld [vmem:[%s46] sm:$0xff]
  %v48 = vmul.f32 %v39, %v47
  %v49 = vmul.f32 %v41, %v45
  %v50 = vsub.f32 %v48, %v49
  %v51 = vmul.f32 %v31, %v50
  %v52 = vmul.f32 %v37, %v47
  %v53 = vmul.f32 %v41, %v43
  %v54 = vsub.f32 %v52, %v53
  %v55 = vmul.f32 %v33, %v54
  %v56 = vsub.f32 %v51, %v55
  %v57 = vmul.f32 %v37, %v45
  %v58 = vmul.f32 %v39, %v43
  %v59 = vsub.f32 %v57, %v58
  %v60 = vmul.f32 %v35, %v59
  %v61 = vadd.f32 %v56, %v60
  %v62 = vld [vmem:[#allocation2] sm:$0xff]
  %v63 = vand.u32 2147483647, %v61
  %64 = vadd.xlane.f32.xlu0 %v63
  %v65 = vpop.xlane.xlu0 %64
  %v66 = vadd.f32 %v62, %v65
  %vm67 = vcmask 7168
  %68 = vst.msk [vmem:[#allocation2] sm:$0xff] %vm67, %v66
  // Predicated region
  $region10: #{volume_normalizer.2} parent=0 // pred_check
    %p69 = pneg %p25
  $region11: #{volume_normalizer.2} parent=0 // pred_check_branch
    %71 = sbr.rel (%p69) target = $region13
  $region12: #{volume_normalizer.2} parent=0 // pred_region
    %v72 = vld [vmem:[#allocation2] sm:$0xff]
    %73 = vst.msk [vmem:[%s1] sm:$0xff] %vm67, %v72
  $region13: #{volume_normalizer.2} parent=0 // pred_fallthru
    _
  // Predicated region
  $region14: #{volume_normalizer.2} parent=0 // pred_check
    _
  $region15: #{volume_normalizer.2} parent=0 // pred_check_branch
    %75 = sbr.rel (0) target = $region17
  $region16: #{volume_normalizer.2} parent=0 // pred_region
    _
  $region17: #{volume_normalizer.2} parent=0 // pred_fallthru
    _
  // Predicated region
  $region18: #{volume_normalizer.2} parent=0 // pred_check
    _
  $region19: #{volume_normalizer.2} parent=0 // pred_check_branch
    %77 = sbr.rel (0) target = $region21
  $region20: #{volume_normalizer.2} parent=0 // pred_region
    _
  $region21: #{volume_normalizer.2} parent=0 // pred_fallthru
    _

</llo_original>
